<compile_context>
chip_gen: v6e
topology: v6e:2x2x1
jax: 0.10.0
libtpu: 0.0.40
codegen_flags: <defaults>
</compile_context>

<pallas_src>
import functools

import jax
import jax.numpy as jnp
from jax.experimental import pallas as pl
from jax.experimental.pallas import tpu as pltpu

EPS = 1e-5
MOMENTUM = 0.9


# --------------------------------------------------------------------------
# sizing helpers
# --------------------------------------------------------------------------
def _sublane_unit(dtype):
    """Sublane packing unit: f32 -> 8, bf16 -> 16, int8/fp8 -> 32."""
    return max(8, 32 // jnp.dtype(dtype).itemsize)


def _vmem_budget_bytes():
    """Conservative per-kernel VMEM budget derived from the chip's capacity."""
    phys = 128 * 1024 * 1024
    try:
        info = pltpu.get_tpu_info()
        phys = int(getattr(info, "vmem_capacity_bytes", phys)) or phys
    except Exception:
        pass
    # Half of physical, capped at 64 MiB (v5e/v6e -> 64 MiB, v7x -> 32 MiB).
    return min(phys // 2, 64 * 1024 * 1024)


def _largest_divisor(n, cap, step):
    """Largest multiple of `step` that divides n and is <= cap (or None)."""
    best = None
    for cand in range(step, min(n, cap) + 1, step):
        if n % cand == 0:
            best = cand
    return best


def _legal_c_tiles(C, unit):
    """Channel tiles that satisfy the (8, 128) block constraint, preferring
    multiples of the dtype's sublane unit. Always includes C (full extent)."""
    legal = sorted(set([c for c in range(8, C, 8) if C % c == 0] + [C]))
    pref = [c for c in legal if (c % unit == 0) or (c == C)]
    return pref if pref else legal


# --------------------------------------------------------------------------
# kernels
# --------------------------------------------------------------------------
def _fused_kernel(inv_count, eps, x_ref, g_ref, b_ref, y_ref, mean_ref, var_ref):
    """Single pass: the whole (N, c_tile, HW) slab is VMEM-resident.

    Reads X once, computes per-channel stats, normalizes in place, writes Y.
    """
    x = x_ref[...].astype(jnp.float32)                     # (N, c_tile, HW)
    xs = jnp.sum(x, axis=0)                                # (c_tile, HW)
    xq = jnp.sum(x * x, axis=0)                            # (c_tile, HW)
    m = jnp.sum(xs, axis=1, keepdims=True) * inv_count     # (c_tile, 1)
    v = jnp.maximum(jnp.sum(xq, axis=1, keepdims=True) * inv_count - m * m, 0.0)
    mean_ref[...] = m
    var_ref[...] = v
    scale = g_ref[...] * jax.lax.rsqrt(v + eps)            # (c_tile, 1)
    shift = b_ref[...] - m * scale
    y_ref[...] = (x * scale[None, :, :] + shift[None, :, :]).astype(y_ref.dtype)


def _stats_kernel(inv_count, eps, x_ref, g_ref, b_ref,
                  mean_ref, var_ref, scale_ref, shift_ref, sum_acc, sq_acc):
    """Fallback pass 1: accumulate per-channel sum / sumsq across (N, HW)."""
    n = pl.program_id(1)
    l = pl.program_id(2)

    @pl.when((n == 0) & (l == 0))
    def _init():
        sum_acc[...] = jnp.zeros_like(sum_acc)
        sq_acc[...] = jnp.zeros_like(sq_acc)

    x = x_ref[...].astype(jnp.float32)                     # (c_tile, hw_tile)
    sum_acc[...] += jnp.sum(x, axis=1, keepdims=True)
    sq_acc[...] += jnp.sum(x * x, axis=1, keepdims=True)

    @pl.when((n == pl.num_programs(1) - 1) & (l == pl.num_programs(2) - 1))
    def _finalize():
        m = sum_acc[...] * inv_count
        v = jnp.maximum(sq_acc[...] * inv_count - m * m, 0.0)   # clamp: rsqrt safety
        sc = g_ref[...] * jax.lax.rsqrt(v + eps)
        mean_ref[...] = m
        var_ref[...] = v
        scale_ref[...] = sc
        shift_ref[...] = b_ref[...] - m * sc


def _norm_kernel(x_ref, scale_ref, shift_ref, y_ref):
    """Fallback pass 2: pure fused-multiply-add, y = x*scale + shift."""
    x = x_ref[...].astype(jnp.float32)                     # (c_tile, hw_tile)
    y_ref[...] = (x * scale_ref[...] + shift_ref[...]).astype(y_ref.dtype)


# --------------------------------------------------------------------------
# wrapper
# --------------------------------------------------------------------------
def batch_norm_forward(x, gamma, beta, moving_mean, moving_var,
                       eps=EPS, momentum=MOMENTUM):
    """Training-mode 4D (NCHW) path of the PyTorch `batch_norm` reference.

    Returns (Y, new_moving_mean, new_moving_var) matching the reference module
    (including its moving_var update formula, reproduced verbatim for parity).
    """
    N, C, H, W = x.shape
    HW = H * W
    count = N * HW
    itemsize = jnp.dtype(x.dtype).itemsize
    unit = _sublane_unit(x.dtype)

    x3 = x.reshape(N, C, HW)                 # free view — no HBM transpose
    g2 = gamma.reshape(C, 1).astype(jnp.float32)
    b2 = beta.reshape(C, 1).astype(jnp.float32)

    budget = _vmem_budget_bytes()
    target_block = max(2 * 1024 * 1024, min(8 * 1024 * 1024, budget // 8))

    c_cands = _legal_c_tiles(C, unit)        # ascending

    # ---- try the fused single-pass path ------------------------------------
    def fused_cost(c):
        blk = N * c * HW
        io = 2 * blk * itemsize + 2 * blk * itemsize       # dbl-buffered in + out
        work = (2 if itemsize == 4 else 3) * blk * 4       # f32 working copies
        return io + work

    fused_fit = [c for c in c_cands if fused_cost(c) <= int(budget * 0.75)]

    if fused_fit:
        # Smallest tile whose X block reaches the target byte size (amortizes
        # the ~0.35us per-step overhead); otherwise the largest that fits.
        c_tile = fused_fit[-1]
        for c in fused_fit:
            if N * c * HW * itemsize >= target_block:
                c_tile = c
                break
        grid = (C // c_tile,)

        y3, mean, var = pl.pallas_call(
            functools.partial(_fused_kernel, 1.0 / count, eps),
            out_shape=(
                jax.ShapeDtypeStruct((N, C, HW), x.dtype),
                jax.ShapeDtypeStruct((C, 1), jnp.float32),
                jax.ShapeDtypeStruct((C, 1), jnp.float32),
            ),
            grid=grid,
            in_specs=[
                pl.BlockSpec((N, c_tile, HW), lambda c: (0, c, 0)),
                pl.BlockSpec((c_tile, 1), lambda c: (c, 0)),
                pl.BlockSpec((c_tile, 1), lambda c: (c, 0)),
            ],
            out_specs=(
                pl.BlockSpec((N, c_tile, HW), lambda c: (0, c, 0)),
                pl.BlockSpec((c_tile, 1), lambda c: (c, 0)),
                pl.BlockSpec((c_tile, 1), lambda c: (c, 0)),
            ),
            compiler_params=pltpu.CompilerParams(
                dimension_semantics=("parallel",),
                vmem_limit_bytes=budget),
            cost_estimate=pl.CostEstimate(
                flops=7 * count * C, transcendentals=C,
                bytes_accessed=2 * count * C * itemsize + 4 * C * 4),
        )(x3, g2, b2)

    # ---- fallback: streaming 2-pass (slab does not fit VMEM) ---------------
    else:
        c_min = c_cands[0]
        hw_cap = max(128, target_block // (c_min * itemsize))
        if HW <= hw_cap:
            hw_tile = HW
        else:
            hw_tile = _largest_divisor(HW, hw_cap, 128)     # lane-dense preferred
            if hw_tile is None:
                full_cost = 4 * c_min * HW * itemsize + 2 * c_min * HW * 4
                if full_cost <= budget:
                    hw_tile = HW                            # full extent, clamped by bytes
                else:
                    hw_tile = _largest_divisor(HW, hw_cap, 1) or 1
        # Grow c_tile toward the target block byte size.
        c_tile = c_min
        for c in c_cands:
            if c * hw_tile * itemsize <= target_block:
                c_tile = c
        grid = (C // c_tile, N, HW // hw_tile)

        # pass 1: per-channel batch stats -> mean/var + fused scale/shift
        mean, var, scale, shift = pl.pallas_call(
            functools.partial(_stats_kernel, 1.0 / count, eps),
            out_shape=tuple(jax.ShapeDtypeStruct((C, 1), jnp.float32)
                            for _ in range(4)),
            grid=grid,
            in_specs=[
                pl.BlockSpec((None, c_tile, hw_tile), lambda c, n, l: (n, c, l)),
                pl.BlockSpec((c_tile, 1), lambda c, n, l: (c, 0)),
                pl.BlockSpec((c_tile, 1), lambda c, n, l: (c, 0)),
            ],
            out_specs=tuple(pl.BlockSpec((c_tile, 1), lambda c, n, l: (c, 0))
                            for _ in range(4)),
            scratch_shapes=[pltpu.VMEM((c_tile, 1), jnp.float32),
                            pltpu.VMEM((c_tile, 1), jnp.float32)],
            compiler_params=pltpu.CompilerParams(
                dimension_semantics=("parallel", "arbitrary", "arbitrary"),
                vmem_limit_bytes=budget),
            cost_estimate=pl.CostEstimate(
                flops=3 * count * C, transcendentals=C,
                bytes_accessed=count * C * itemsize + 4 * C * 4),
        )(x3, g2, b2)

        # pass 2: fully parallel fused FMA normalize
        y3 = pl.pallas_call(
            _norm_kernel,
            out_shape=jax.ShapeDtypeStruct((N, C, HW), x.dtype),
            grid=grid,
            in_specs=[
                pl.BlockSpec((None, c_tile, hw_tile), lambda c, n, l: (n, c, l)),
                pl.BlockSpec((c_tile, 1), lambda c, n, l: (c, 0)),
                pl.BlockSpec((c_tile, 1), lambda c, n, l: (c, 0)),
            ],
            out_specs=pl.BlockSpec((None, c_tile, hw_tile),
                                   lambda c, n, l: (n, c, l)),
            compiler_params=pltpu.CompilerParams(
                dimension_semantics=("parallel", "parallel", "parallel"),
                vmem_limit_bytes=budget),
            cost_estimate=pl.CostEstimate(
                flops=2 * count * C, transcendentals=0,
                bytes_accessed=2 * count * C * itemsize + 2 * C * 4),
        )(x3, scale, shift)

    y = y3.reshape(N, C, H, W)               # free view back to NCHW

    m4 = mean.reshape(1, C, 1, 1)
    v4 = var.reshape(1, C, 1, 1)
    # Moving-stat updates replicate the reference code *verbatim* (its
    # moving_var formula mixes the batch mean into the EMA; reproduced for
    # semantic parity with the quoted module).
    new_moving_mean = momentum * moving_mean + (1.0 - momentum) * m4
    new_moving_var = momentum * moving_var + (1.0 - v4) * m4
    return y, new_moving_mean, new_moving_var


if __name__ == "__main__":
    key = jax.random.PRNGKey(0)
    N, C, H, W = 2, 4, 16, 16
    x = jax.random.normal(key, (N, C, H, W), dtype=jnp.float32)

    # Deterministic parameter init matching BatchNorm.__init__ (num_dims=4).
    gamma = jnp.ones((1, C, 1, 1), jnp.float32)
    beta = jnp.zeros((1, C, 1, 1), jnp.float32)
    moving_mean = jnp.zeros((1, C, 1, 1), jnp.float32)
    moving_var = jnp.ones((1, C, 1, 1), jnp.float32)

    y, mm, mv = batch_norm_forward(x, gamma, beta, moving_mean, moving_var)
    jax.block_until_ready((y, mm, mv))

    # Pure-JAX reference of the full training-mode forward (incl. moving stats).
    m_ref = jnp.mean(x, axis=(0, 2, 3), keepdims=True)
    v_ref = jnp.mean((x - m_ref) ** 2, axis=(0, 2, 3), keepdims=True)
    y_ref = gamma * (x - m_ref) / jnp.sqrt(v_ref + EPS) + beta
    mm_ref = MOMENTUM * moving_mean + (1.0 - MOMENTUM) * m_ref
    mv_ref = MOMENTUM * moving_var + (1.0 - v_ref) * m_ref

    assert jnp.allclose(y, y_ref, atol=1e-5, rtol=1e-5), "Y mismatch vs reference"
    assert jnp.allclose(mm, mm_ref, atol=1e-6, rtol=1e-6), "moving_mean mismatch"
    assert jnp.allclose(mv, mv_ref, atol=1e-6, rtol=1e-6), "moving_var mismatch"

    print("KERNEL_OK")
</pallas_src>

<mosaic_0001>
module attributes {stable_mosaic.version = 11 : i64} {
  func.func @_fused_kernel(%arg0: i32, %arg1: memref<2x4x256xf32, #tpu.memory_space<vmem>>, %arg2: memref<4x1xf32, #tpu.memory_space<vmem>>, %arg3: memref<4x1xf32, #tpu.memory_space<vmem>>, %arg4: memref<2x4x256xf32, #tpu.memory_space<vmem>>, %arg5: memref<4x1xf32, #tpu.memory_space<vmem>>, %arg6: memref<4x1xf32, #tpu.memory_space<vmem>>) attributes {dimension_semantics = [#tpu.dimension_semantics<parallel>], iteration_bounds = array<i64: 1>, scalar_prefetch = 0 : i64, scratch_operands = 0 : i64, tpu.core_type = #tpu.core_type<tc>, window_params = [{transform_indices = @transform_0, window_bounds = array<i64: 2, 4, 256>}, {transform_indices = @transform_1, window_bounds = array<i64: 4, 1>}, {transform_indices = @transform_2, window_bounds = array<i64: 4, 1>}, {transform_indices = @transform_3, window_bounds = array<i64: 2, 4, 256>}, {transform_indices = @transform_4, window_bounds = array<i64: 4, 1>}, {transform_indices = @transform_5, window_bounds = array<i64: 4, 1>}]} {
    %c0 = arith.constant 0 : index
    %c0_0 = arith.constant 0 : index
    %c0_1 = arith.constant 0 : index
    %0 = vector.load %arg1[%c0, %c0_0, %c0_1] : memref<2x4x256xf32, #tpu.memory_space<vmem>>, vector<2x4x256xf32>
    %cst = arith.constant dense<0.000000e+00> : vector<4x256xf32>
    %1 = vector.multi_reduction <add>, %0, %cst [0] : vector<2x4x256xf32> to vector<4x256xf32>
    %2 = arith.mulf %0, %0 : vector<2x4x256xf32>
    %cst_2 = arith.constant dense<0.000000e+00> : vector<4x256xf32>
    %3 = vector.multi_reduction <add>, %2, %cst_2 [0] : vector<2x4x256xf32> to vector<4x256xf32>
    %cst_3 = arith.constant dense<0.000000e+00> : vector<4xf32>
    %4 = vector.multi_reduction <add>, %1, %cst_3 [1] : vector<4x256xf32> to vector<4xf32>
    %5 = vector.shape_cast %4 : vector<4xf32> to vector<4x1xf32>
    %cst_4 = arith.constant 0.001953125 : f32
    %6 = vector.broadcast %cst_4 : f32 to vector<4x1xf32>
    %7 = arith.mulf %5, %6 : vector<4x1xf32>
    %cst_5 = arith.constant dense<0.000000e+00> : vector<4xf32>
    %8 = vector.multi_reduction <add>, %3, %cst_5 [1] : vector<4x256xf32> to vector<4xf32>
    %9 = vector.shape_cast %8 : vector<4xf32> to vector<4x1xf32>
    %cst_6 = arith.constant 0.001953125 : f32
    %10 = vector.broadcast %cst_6 : f32 to vector<4x1xf32>
    %11 = arith.mulf %9, %10 : vector<4x1xf32>
    %12 = arith.mulf %7, %7 : vector<4x1xf32>
    %13 = arith.subf %11, %12 : vector<4x1xf32>
    %cst_7 = arith.constant 0.000000e+00 : f32
    %14 = vector.broadcast %cst_7 : f32 to vector<4x1xf32>
    %15 = arith.maximumf %13, %14 : vector<4x1xf32>
    %c0_8 = arith.constant 0 : index
    %c0_9 = arith.constant 0 : index
    %16 = vector.load %arg5[%c0_8, %c0_9] : memref<4x1xf32, #tpu.memory_space<vmem>>, vector<4x1xf32>
    tpu.vector_store %arg5[%c0_8, %c0_9], %7 {strides = array<i32>} : memref<4x1xf32, #tpu.memory_space<vmem>>, vector<4x1xf32>,
    %c0_10 = arith.constant 0 : index
    %c0_11 = arith.constant 0 : index
    %17 = vector.load %arg6[%c0_10, %c0_11] : memref<4x1xf32, #tpu.memory_space<vmem>>, vector<4x1xf32>
    tpu.vector_store %arg6[%c0_10, %c0_11], %15 {strides = array<i32>} : memref<4x1xf32, #tpu.memory_space<vmem>>, vector<4x1xf32>,
    %c0_12 = arith.constant 0 : index
    %c0_13 = arith.constant 0 : index
    %18 = vector.load %arg2[%c0_12, %c0_13] : memref<4x1xf32, #tpu.memory_space<vmem>>, vector<4x1xf32>
    %cst_14 = arith.constant 9.99999974E-6 : f32
    %19 = vector.broadcast %cst_14 : f32 to vector<4x1xf32>
    %20 = arith.addf %15, %19 : vector<4x1xf32>
    %21 = math.rsqrt %20 : vector<4x1xf32>
    %22 = arith.mulf %18, %21 : vector<4x1xf32>
    %c0_15 = arith.constant 0 : index
    %c0_16 = arith.constant 0 : index
    %23 = vector.load %arg3[%c0_15, %c0_16] : memref<4x1xf32, #tpu.memory_space<vmem>>, vector<4x1xf32>
    %24 = arith.mulf %7, %22 : vector<4x1xf32>
    %25 = arith.subf %23, %24 : vector<4x1xf32>
    %26 = vector.shape_cast %22 : vector<4x1xf32> to vector<1x4x1xf32>
    %27 = vector.broadcast %26 : vector<1x4x1xf32> to vector<2x4x256xf32>
    %28 = arith.mulf %0, %27 : vector<2x4x256xf32>
    %29 = vector.shape_cast %25 : vector<4x1xf32> to vector<1x4x1xf32>
    %30 = vector.broadcast %29 : vector<1x4x1xf32> to vector<2x4x256xf32>
    %31 = arith.addf %28, %30 : vector<2x4x256xf32>
    %c0_17 = arith.constant 0 : index
    %c0_18 = arith.constant 0 : index
    %c0_19 = arith.constant 0 : index
    %32 = vector.load %arg4[%c0_17, %c0_18, %c0_19] : memref<2x4x256xf32, #tpu.memory_space<vmem>>, vector<2x4x256xf32>
    tpu.vector_store %arg4[%c0_17, %c0_18, %c0_19], %31 {strides = array<i32>} : memref<2x4x256xf32, #tpu.memory_space<vmem>>, vector<2x4x256xf32>,
    return
  }
  func.func @transform_0(%arg0: i32) -> (i32, i32, i32) {
    %c0_i32 = arith.constant 0 : i32
    %c0_i32_0 = arith.constant 0 : i32
    %c0_i32_1 = arith.constant 0 : i32
    return %c0_i32, %arg0, %c0_i32_0 : i32, i32, i32
  }
  func.func @transform_1(%arg0: i32) -> (i32, i32) {
    %c0_i32 = arith.constant 0 : i32
    %c0_i32_0 = arith.constant 0 : i32
    return %arg0, %c0_i32 : i32, i32
  }
  func.func @transform_2(%arg0: i32) -> (i32, i32) {
    %c0_i32 = arith.constant 0 : i32
    %c0_i32_0 = arith.constant 0 : i32
    return %arg0, %c0_i32 : i32, i32
  }
  func.func @transform_3(%arg0: i32) -> (i32, i32, i32) {
    %c0_i32 = arith.constant 0 : i32
    %c0_i32_0 = arith.constant 0 : i32
    %c0_i32_1 = arith.constant 0 : i32
    return %c0_i32, %arg0, %c0_i32_0 : i32, i32, i32
  }
  func.func @transform_4(%arg0: i32) -> (i32, i32) {
    %c0_i32 = arith.constant 0 : i32
    %c0_i32_0 = arith.constant 0 : i32
    return %arg0, %c0_i32 : i32, i32
  }
  func.func @transform_5(%arg0: i32) -> (i32, i32) {
    %c0_i32 = arith.constant 0 : i32
    %c0_i32_0 = arith.constant 0 : i32
    return %arg0, %c0_i32 : i32, i32
  }
}

</mosaic_0001>

<llo_original>
// kernel: tpu_custom_call.1
$region0: #{tpu_custom_call.1}
  #allocation0 [shape = 'u32[]', space=smem, size = 0x4, offset = 0x4, fixed_abs, tag = 'smem constant byte address 0x4 - core index']
  #allocation1 [shape = 'u32[144,128]{1,0:T(1,128)}', space=vmem, size = 0x12000, scoped, tag = 'internal scratch']
  %s0 = inlined_call_operand.hbm [shape: f32[2,4,256], index: 0, kind: input, shape index: {}]
  %s1 = inlined_call_operand.vmem [shape: f32[4,1], index: 1, kind: input, shape index: {}]
  %s2 = inlined_call_operand.vmem [shape: f32[4,1], index: 2, kind: input, shape index: {}]
  %s3 = inlined_call_operand.hbm [shape: f32[2,4,256], index: 3, kind: output, shape index: {0}]
  %s4 = inlined_call_operand.vmem [shape: f32[4,1], index: 4, kind: output, shape index: {1}]
  %s5 = inlined_call_operand.vmem [shape: f32[4,1], index: 5, kind: output, shape index: {2}]
  %6 = xla_tuple %s3, %s4, %s5
  %s7 = sld [smem:[#allocation0]]
  $region42: #{tpu_custom_call.1} parent=0
    _
  %s9 = ssub.s32 1, %s7
  %s10 = scalar_select 0, %s9, %s7
  $region1: #{tpu_custom_call.1} parent=0
    #allocation2 [shape = 'u8[8192]{0}', space=vmem, size = 0x2000, scoped, tag = 'input window, operand 0, single buffered']
    #allocation3 [shape = 's32[1]{0}', space=sflag, size = 0x4, scoped, tag = 'scoped memory for tpu_custom_call.1']
    #allocation4 [shape = 's32[1]{0}', space=sflag, size = 0x4, scoped, tag = 'scoped memory for tpu_custom_call.1']
    #allocation5 [shape = 'u8[8192]{0}', space=vmem, size = 0x2000, scoped, tag = 'output window, operand 0, single buffered']
    %11 = vsyncpa [#allocation3], 0
    %12 = vsyncpa [#allocation4], 0
    // Predicated region
    $region2: #{tpu_custom_call.1} parent=1 // pred_check
      _
    $region3: #{tpu_custom_call.1} parent=1 // pred_check_branch
      %14 = sbr.rel (0) target = $region5
    $region4: #{tpu_custom_call.1} parent=1 // pred_region
      %s16 = ssub.s32 256, 256
      %17 = vsyncadd [#allocation3], %s16
      %s18 = sshll.u32 [#allocation2], 4
      %s19 = int_to_ptr.vmem [resolvable:$true] %s18
      %24 = dma.hbm_to_vmem [thread:$0]  %s0, 256, %s19, [#allocation3], 128, 128, 8
    $region5: #{tpu_custom_call.1} parent=1 // pred_fallthru
      _
    // Predicated region
    $region6: #{tpu_custom_call.1} parent=1 // pred_check
      _
    $region7: #{tpu_custom_call.1} parent=1 // pred_check_branch
      %26 = sbr.rel (0) target = $region9
    $region8: #{tpu_custom_call.1} parent=1 // pred_region
      _
    $region9: #{tpu_custom_call.1} parent=1 // pred_fallthru
      _
    // Predicated region
    $region10: #{tpu_custom_call.1} parent=1 // pred_check
      _
    $region11: #{tpu_custom_call.1} parent=1 // pred_check_branch
      %28 = sbr.rel (0) target = $region13
    $region12: #{tpu_custom_call.1} parent=1 // pred_region
      _
    $region13: #{tpu_custom_call.1} parent=1 // pred_fallthru
      _
    // Predicated region
    $region14: #{tpu_custom_call.1} parent=1 // pred_check
      _
    $region15: #{tpu_custom_call.1} parent=1 // pred_check_branch
      %30 = sbr.rel (0) target = $region17
    $region16: #{tpu_custom_call.1} parent=1 // pred_region
      %31 = dma.done [#allocation3], 256
    $region17: #{tpu_custom_call.1} parent=1 // pred_fallthru
      _
    %v32 = vld [vmem:[#allocation2] sm:$0xff]
    %v33 = vld [vmem:[#allocation2 + $0x8] sm:$0xff]
    %v36 = vcombine.high %v32, %v32
    %v37 = vcombine.high %v33, %v33
    %vm40 = vcmask 1043456
    %v41 = vsel %vm40, %v32, 0.0
    %v42 = vsel %vm40, %v33, 0.0
    %v43 = vadd.f32 %v41, %v42
    %v44 = vsel %vm40, %v36, 0.0
    %v45 = vsel %vm40, %v37, 0.0
    %v46 = vadd.f32 %v44, %v45
    %v47 = vmul.f32 %v32, %v32
    %v48 = vmul.f32 %v33, %v33
    %v51 = vcombine.high %v47, %v47
    %v52 = vcombine.high %v48, %v48
    %v55 = vsel %vm40, %v47, 0.0
    %v56 = vsel %vm40, %v48, 0.0
    %v57 = vadd.f32 %v55, %v56
    %v58 = vsel %vm40, %v51, 0.0
    %v59 = vsel %vm40, %v52, 0.0
    %v60 = vadd.f32 %v58, %v59
    %v61 = vsel %vm40, %v43, 0.0
    %v62 = vsel %vm40, %v46, 0.0
    %v63 = vadd.f32 %v61, %v62
    %64 = vadd.xlane.f32.xlu0 %v63
    %v65 = vpop.xlane.xlu0 %64
    %v66 = vmul.f32 %v65, 0.001953125
    %v67 = vsel %vm40, %v57, 0.0
    %v68 = vsel %vm40, %v60, 0.0
    %v69 = vadd.f32 %v67, %v68
    %70 = vadd.xlane.f32.xlu0 %v69
    %v71 = vpop.xlane.xlu0 %70
    %v72 = vmul.f32 %v71, 0.001953125
    %v73 = vmul.f32 %v66, %v66
    %v74 = vsub.f32 %v72, %v73
    %v75 = vmax.f32 %v74, 0.0
    %vm76 = vcmask 3072
    %77 = vst.msk [vmem:[%s4] sm:$0xf] %vm76, %v66
    %78 = vst.msk [vmem:[%s5] sm:$0xf] %vm76, %v75
    %v79 = vld [vmem:[%s1] sm:$0xf]
    %v80 = vadd.f32 %v75, 1e-05
    %v81 = vrsqrt.pop %v80
    %v82 = vmul.f32 %v79, %v81
    %v83 = vld [vmem:[%s2] sm:$0xf]
    %v84 = vmul.f32 %v66, %v82
    %v85 = vsub.f32 %v83, %v84
    %87 = vset.pattern.permute.xlu0 0
    %88 = vperm.xlu0 %87, %v82
    %v89 = vpop.permute.xlu0 %88
    %v91 = vunpack.c.l.s4 839922192
    %v92 = vunpack.c.0.s8 %v91
    %v93 = vlaneseq
    %v94 = vshrl.u32 %v93, 7
    %v95 = vsub.s32 %v92, %v94
    %v96 = vrot.slane %v89, %v95
    %v98 = vmul.f32 %v32, %v96
    %v99 = vmul.f32 %v33, %v96
    %101 = vset.pattern.permute.xlu0 0
    %102 = vperm.xlu0 %101, %v85
    %v103 = vpop.permute.xlu0 %102
    %v105 = vunpack.c.l.s4 839922192
    %v106 = vunpack.c.0.s8 %v105
    %v107 = vlaneseq
    %v108 = vshrl.u32 %v107, 7
    %v109 = vsub.s32 %v106, %v108
    %v110 = vrot.slane %v103, %v109
    %v112 = vadd.f32 %v98, %v110
    %v113 = vadd.f32 %v99, %v110
    %114 = vst [vmem:[#allocation5] sm:$0xff] %v112
    %115 = vst [vmem:[#allocation5 + $0x8] sm:$0xff] %v113
    // Predicated region
    $region18: #{tpu_custom_call.1} parent=1 // pred_check
      _
    $region19: #{tpu_custom_call.1} parent=1 // pred_check_branch
      %117 = sbr.rel (0) target = $region21
    $region20: #{tpu_custom_call.1} parent=1 // pred_region
      %s119 = ssub.s32 256, 256
      %120 = vsyncadd [#allocation4], %s119
      %s121 = sshll.u32 [#allocation5], 4
      %s122 = int_to_ptr.vmem [resolvable:$true] %s121
      %127 = dma.vmem_to_hbm [thread:$0]  %s122, 256, %s3, [#allocation4], 128, 128, 8
    $region21: #{tpu_custom_call.1} parent=1 // pred_fallthru
      _
    // Predicated region
    $region22: #{tpu_custom_call.1} parent=1 // pred_check
      _
    $region23: #{tpu_custom_call.1} parent=1 // pred_check_branch
      %129 = sbr.rel (0) target = $region25
    $region24: #{tpu_custom_call.1} parent=1 // pred_region
      _
    $region25: #{tpu_custom_call.1} parent=1 // pred_fallthru
      _
    // Predicated region
    $region26: #{tpu_custom_call.1} parent=1 // pred_check
      _
    $region27: #{tpu_custom_call.1} parent=1 // pred_check_branch
      %131 = sbr.rel (0) target = $region29
    $region28: #{tpu_custom_call.1} parent=1 // pred_region
      _
    $region29: #{tpu_custom_call.1} parent=1 // pred_fallthru
      _
    // Predicated region
    $region30: #{tpu_custom_call.1} parent=1 // pred_check
      _
    $region31: #{tpu_custom_call.1} parent=1 // pred_check_branch
      %133 = sbr.rel (0) target = $region33
    $region32: #{tpu_custom_call.1} parent=1 // pred_region
      %134 = dma.done [#allocation4], 256
    $region33: #{tpu_custom_call.1} parent=1 // pred_fallthru
      _
    // Predicated region
    $region34: #{tpu_custom_call.1} parent=1 // pred_check
      _
    $region35: #{tpu_custom_call.1} parent=1 // pred_check_branch
      %136 = sbr.rel (0) target = $region37
    $region36: #{tpu_custom_call.1} parent=1 // pred_region
      _
    $region37: #{tpu_custom_call.1} parent=1 // pred_fallthru
      _
    // Predicated region
    $region38: #{tpu_custom_call.1} parent=1 // pred_check
      _
    $region39: #{tpu_custom_call.1} parent=1 // pred_check_branch
      %138 = sbr.rel (0) target = $region41
    $region40: #{tpu_custom_call.1} parent=1 // pred_region
      _
    $region41: #{tpu_custom_call.1} parent=1 // pred_fallthru
      _
    %139 = vsyncpa [#allocation3], 1
    %140 = vsyncpa [#allocation4], 1

</llo_original>
